<compile_context>
chip_gen: v5e
topology: v5e:2x2
jax: 0.10.0
libtpu: 0.0.40
codegen_flags: <defaults>
</compile_context>

<pallas_src>
import math
import functools

import jax
import jax.numpy as jnp
from jax import lax
from jax.experimental import pallas as pl
from jax.experimental.pallas import tpu as pltpu


# ------------------------- helpers -------------------------

def _fit_tile(dim, target):
    """Largest of (target, dim) that divides dim; falls back to the full dim so the
    block either is a multiple of the (8,128) tile (targets are 256/512) or equals the
    full array dim.  Correctness-first: never produces a ragged block."""
    t = min(target, dim)
    return t if dim % t == 0 else dim


# ------------------------- Pallas kernels -------------------------

def _linear_kernel(x_ref, w_ref, y_ref, acc_ref):
    # y = x @ W.T with W in PyTorch (out, in) layout.
    # Contract dim 1 of x with dim 1 of w -> (tm, tn); no in-kernel transpose.
    @pl.when(pl.program_id(2) == 0)
    def _():
        acc_ref[...] = jnp.zeros_like(acc_ref)

    acc_ref[...] += lax.dot_general(
        x_ref[...], w_ref[...],
        dimension_numbers=(((1,), (1,)), ((), ())),
        preferred_element_type=jnp.float32,
    )

    @pl.when(pl.program_id(2) == pl.num_programs(2) - 1)
    def _():
        y_ref[...] = acc_ref[...].astype(y_ref.dtype)


def _attn_res_ln_kernel(q_ref, k_ref, v_ref, res_ref, gain_ref, bias_ref,
                        y_ref, attn_ref, o_acc, *, heads, d_k, scale, eps):
    # One batch per grid step, all heads.  q/k/v blocks are (1, S, heads*d_k): heads live
    # in the feature (lane) dim and are selected by static slices -- no reshapes or
    # transposes of laid-out data.  Per-head context vectors go into the f32 VMEM scratch
    # `o_acc`; residual + LayerNorm are applied in-register, so the intermediate `out`
    # never round-trips through HBM.
    scale_c = jnp.asarray(scale, q_ref.dtype)
    for h in range(heads):                      # static unroll over heads
        lo, hi = h * d_k, (h + 1) * d_k
        # fold 1/sqrt(d_k) into q (S_q*d_k mults instead of S_q*S_k)
        qh = q_ref[0, :, lo:hi] * scale_c                           # (S_q, d_k)
        kh = k_ref[0, :, lo:hi]                                     # (S_k, d_k)
        vh = v_ref[0, :, lo:hi]                                     # (S_k, d_k)

        # scores: contract d_k of q against d_k of k (no explicit k.T)
        s = lax.dot_general(
            qh, kh,
            dimension_numbers=(((1,), (1,)), ((), ())),
            preferred_element_type=jnp.float32,
        )                                                           # (S_q, S_k) f32

        m = jnp.max(s, axis=-1, keepdims=True)
        e = jnp.exp(s - m)
        # softmax denominator via EUP reciprocal (off the VPU critical slot)
        p = e * pl.reciprocal(jnp.sum(e, axis=-1, keepdims=True), approx=True)

        attn_ref[0, h] = p.astype(attn_ref.dtype)
        o_acc[:, lo:hi] = jnp.dot(p.astype(vh.dtype), vh,
                                  preferred_element_type=jnp.float32)

    # residual add + LayerNorm over the feature dim, in f32
    z = o_acc[...] + res_ref[0].astype(jnp.float32)
    mu = jnp.mean(z, axis=-1, keepdims=True)
    d = z - mu
    # unbiased std (ddof=1), matching torch.std default in old onmt LayerNorm
    var = jnp.sum(d * d, axis=-1, keepdims=True) / (z.shape[-1] - 1)
    ln = d / (jnp.sqrt(var) + eps)
    y_ref[0] = (ln * gain_ref[...].astype(jnp.float32)
                + bias_ref[...].astype(jnp.float32)).astype(y_ref.dtype)


def _attn_kernel(q_ref, k_ref, v_ref, o_ref, attn_ref, *, heads, d_k, scale):
    # Fallback (heads_per_block < n_head): one (batch, head-block) slice per grid step.
    scale_c = jnp.asarray(scale, q_ref.dtype)
    for h in range(heads):
        lo, hi = h * d_k, (h + 1) * d_k
        qh = q_ref[0, :, lo:hi] * scale_c
        kh = k_ref[0, :, lo:hi]
        vh = v_ref[0, :, lo:hi]
        s = lax.dot_general(
            qh, kh,
            dimension_numbers=(((1,), (1,)), ((), ())),
            preferred_element_type=jnp.float32,
        )
        m = jnp.max(s, axis=-1, keepdims=True)
        e = jnp.exp(s - m)
        p = e * pl.reciprocal(jnp.sum(e, axis=-1, keepdims=True), approx=True)
        attn_ref[0, h] = p.astype(attn_ref.dtype)
        o = jnp.dot(p.astype(vh.dtype), vh, preferred_element_type=jnp.float32)
        o_ref[0, :, lo:hi] = o.astype(o_ref.dtype)


def _res_ln_kernel(out_ref, res_ref, gain_ref, bias_ref, y_ref, *, eps):
    # Fallback residual add + LayerNorm over the last (feature) dim, in f32.
    z = out_ref[...].astype(jnp.float32) + res_ref[...].astype(jnp.float32)
    mu = jnp.mean(z, axis=-1, keepdims=True)
    d = z - mu
    var = jnp.sum(d * d, axis=-1, keepdims=True) / (z.shape[-1] - 1)
    ln = d / (jnp.sqrt(var) + eps)
    y_ref[...] = (ln * gain_ref[...].astype(jnp.float32)
                  + bias_ref[...].astype(jnp.float32)).astype(y_ref.dtype)


# ------------------------- wrappers -------------------------

def _linear_nobias(x2d, w, *, tm=256, tn=256, tk=512):
    M, K = x2d.shape
    O = w.shape[0]
    tm = _fit_tile(M, tm)
    tn = _fit_tile(O, tn)
    tk = _fit_tile(K, tk)
    return pl.pallas_call(
        _linear_kernel,
        out_shape=jax.ShapeDtypeStruct((M, O), x2d.dtype),
        grid_spec=pltpu.PrefetchScalarGridSpec(
            num_scalar_prefetch=0,
            grid=(M // tm, O // tn, K // tk),
            in_specs=[
                pl.BlockSpec((tm, tk), lambda i, j, k: (i, k)),
                pl.BlockSpec((tn, tk), lambda i, j, k: (j, k)),
            ],
            out_specs=pl.BlockSpec((tm, tn), lambda i, j, k: (i, j)),
            scratch_shapes=[pltpu.VMEM((tm, tn), jnp.float32)],
        ),
        compiler_params=pltpu.CompilerParams(
            dimension_semantics=("parallel", "parallel", "arbitrary")),
    )(x2d, w)


def _attention_res_ln_fused(q, k, v, residual, gain, bias, n_head, d_k, *, eps=1e-3):
    B, S_q, d_model = q.shape
    S_k = k.shape[1]
    kern = functools.partial(_attn_res_ln_kernel, heads=n_head, d_k=d_k,
                             scale=1.0 / math.sqrt(d_k), eps=eps)
    y, attn = pl.pallas_call(
        kern,
        out_shape=(
            jax.ShapeDtypeStruct((B, S_q, d_model), residual.dtype),
            jax.ShapeDtypeStruct((B, n_head, S_q, S_k), q.dtype),
        ),
        grid=(B,),
        in_specs=[
            pl.BlockSpec((1, S_q, d_model), lambda b: (b, 0, 0)),
            pl.BlockSpec((1, S_k, d_model), lambda b: (b, 0, 0)),
            pl.BlockSpec((1, S_k, d_model), lambda b: (b, 0, 0)),
            pl.BlockSpec((1, S_q, d_model), lambda b: (b, 0, 0)),
            pl.BlockSpec((1, d_model), lambda b: (0, 0)),
            pl.BlockSpec((1, d_model), lambda b: (0, 0)),
        ],
        out_specs=(
            pl.BlockSpec((1, S_q, d_model), lambda b: (b, 0, 0)),
            pl.BlockSpec((1, n_head, S_q, S_k), lambda b: (b, 0, 0, 0)),
        ),
        scratch_shapes=[pltpu.VMEM((S_q, d_model), jnp.float32)],
        compiler_params=pltpu.CompilerParams(dimension_semantics=("parallel",)),
    )(q, k, v, residual, gain.reshape(1, d_model), bias.reshape(1, d_model))
    return y, attn


def _attention(q, k, v, n_head, d_k, heads_per_block):
    B, S_q, d_model = q.shape
    S_k = k.shape[1]
    hb = heads_per_block
    assert n_head % hb == 0
    hd = hb * d_k
    kern = functools.partial(_attn_kernel, heads=hb, d_k=d_k,
                             scale=1.0 / math.sqrt(d_k))
    out, attn = pl.pallas_call(
        kern,
        out_shape=(
            jax.ShapeDtypeStruct((B, S_q, d_model), q.dtype),
            jax.ShapeDtypeStruct((B, n_head, S_q, S_k), q.dtype),
        ),
        grid=(B, n_head // hb),
        in_specs=[
            pl.BlockSpec((1, S_q, hd), lambda b, h: (b, 0, h)),
            pl.BlockSpec((1, S_k, hd), lambda b, h: (b, 0, h)),
            pl.BlockSpec((1, S_k, hd), lambda b, h: (b, 0, h)),
        ],
        out_specs=(
            pl.BlockSpec((1, S_q, hd), lambda b, h: (b, 0, h)),
            pl.BlockSpec((1, hb, S_q, S_k), lambda b, h: (b, h, 0, 0)),
        ),
        compiler_params=pltpu.CompilerParams(
            dimension_semantics=("parallel", "parallel")),
    )(q, k, v)
    return out, attn


def _residual_layernorm(out2d, res2d, gain, bias, *, eps=1e-3, tm=512):
    M, D = out2d.shape
    tm = _fit_tile(M, tm)
    kern = functools.partial(_res_ln_kernel, eps=eps)
    return pl.pallas_call(
        kern,
        out_shape=jax.ShapeDtypeStruct((M, D), res2d.dtype),
        grid=(M // tm,),
        in_specs=[
            pl.BlockSpec((tm, D), lambda i: (i, 0)),
            pl.BlockSpec((tm, D), lambda i: (i, 0)),
            pl.BlockSpec((1, D), lambda i: (0, 0)),
            pl.BlockSpec((1, D), lambda i: (0, 0)),
        ],
        out_specs=pl.BlockSpec((tm, D), lambda i: (i, 0)),
        compiler_params=pltpu.CompilerParams(dimension_semantics=("parallel",)),
    )(out2d, res2d, gain.reshape(1, D), bias.reshape(1, D))


def multi_headed_attention(key, value, query, params, n_head,
                           *, compute_dtype=None, heads_per_block=None):
    """Pallas implementation of MultiHeadedAttention.forward (mask=None, eval mode).

    key/value/query: (B, S, d_model).  Returns (layer_norm(out + query), attn) with
    attn shaped (B * n_head, S_q, S_k), matching the PyTorch module.
    compute_dtype: optional dtype (e.g. jnp.bfloat16) for MXU operands; accumulation
    is always f32 and the normalized output keeps the input dtype.
    heads_per_block: optional; process fewer heads per grid step (bounds VMEM for very
    long sequences) at the cost of an extra residual+LN pass over HBM.
    """
    B, S_q, d_model = query.shape
    S_k = key.shape[1]
    d_k = d_model // n_head
    io_dtype = query.dtype
    cdt = io_dtype if compute_dtype is None else compute_dtype

    key_c = key.astype(cdt)
    value_c = value.astype(cdt)
    query_c = query.astype(cdt)
    w_k = params["w_keys"].astype(cdt)
    w_v = params["w_values"].astype(cdt)
    w_q = params["w_query"].astype(cdt)

    # --- projections: tiled, pipelined MXU matmuls (x @ W.T without transposing W) ---
    key_up = _linear_nobias(key_c.reshape(B * S_k, d_model), w_k).reshape(B, S_k, d_model)
    value_up = _linear_nobias(value_c.reshape(B * S_k, d_model), w_v).reshape(B, S_k, d_model)
    query_up = _linear_nobias(query_c.reshape(B * S_q, d_model), w_q).reshape(B, S_q, d_model)

    if heads_per_block is None or heads_per_block == n_head:
        # --- fused attention + residual + LayerNorm: `out` never touches HBM ---
        y, attn4 = _attention_res_ln_fused(
            query_up, key_up, value_up, query,
            params["ln_gain"], params["ln_bias"], n_head, d_k)
    else:
        # --- fallback: attention per head-block, then tiled residual + LayerNorm ---
        out, attn4 = _attention(query_up, key_up, value_up, n_head, d_k, heads_per_block)
        y = _residual_layernorm(
            out.reshape(B * S_q, d_model),
            query.reshape(B * S_q, d_model),
            params["ln_gain"],
            params["ln_bias"],
        ).reshape(B, S_q, d_model)

    # (B, H, S_q, S_k) -> (B*H, S_q, S_k) is a pure reshape (head-major within batch),
    # exactly matching the PyTorch shape()/view layout -- no transpose needed.
    attn = attn4.reshape(B * n_head, S_q, S_k)
    return y, attn


# ------------------------- pure-JAX reference (for correctness check) -------------------------

def _reference(key, value, query, params, n_head, *, eps=1e-3):
    B, S, d_model = query.shape
    d_k = d_model // n_head

    def proj(x, w):
        return jnp.einsum("bsd,od->bso", x, w)

    def shape(x):
        return x.reshape(B, S, n_head, d_k).transpose(0, 2, 1, 3).reshape(B * n_head, S, d_k)

    ku = shape(proj(key, params["w_keys"]))
    vu = shape(proj(value, params["w_values"]))
    qu = shape(proj(query, params["w_query"]))
    scaled = jnp.einsum("bqd,bkd->bqk", qu, ku) / math.sqrt(d_k)
    attn = jax.nn.softmax(scaled, axis=-1)
    out = jnp.einsum("bqk,bkd->bqd", attn, vu)
    out = out.reshape(B, n_head, S, d_k).transpose(0, 2, 1, 3).reshape(B, S, d_model)
    z = out + query
    mu = jnp.mean(z, axis=-1, keepdims=True)
    var = jnp.sum((z - mu) ** 2, axis=-1, keepdims=True) / (d_model - 1)
    ln = (z - mu) / (jnp.sqrt(var) + eps)
    y = ln * params["ln_gain"] + params["ln_bias"]
    return y, attn


# ------------------------- demo -------------------------

if __name__ == "__main__":
    B, S, d_model, n_head = 2, 8, 32, 4

    rng = jax.random.PRNGKey(0)
    k1, k2, k3, kw1, kw2, kw3 = jax.random.split(rng, 6)

    key_in = jax.random.normal(k1, (B, S, d_model), jnp.float32)
    value_in = jax.random.normal(k2, (B, S, d_model), jnp.float32)
    query_in = jax.random.normal(k3, (B, S, d_model), jnp.float32)

    # Deterministic parameter init (PyTorch Linear default: U(-1/sqrt(in), 1/sqrt(in)))
    bound = 1.0 / math.sqrt(d_model)
    params = {
        "w_keys": jax.random.uniform(kw1, (d_model, d_model), jnp.float32, -bound, bound),
        "w_values": jax.random.uniform(kw2, (d_model, d_model), jnp.float32, -bound, bound),
        "w_query": jax.random.uniform(kw3, (d_model, d_model), jnp.float32, -bound, bound),
        "ln_gain": jnp.ones((d_model,), jnp.float32),
        "ln_bias": jnp.zeros((d_model,), jnp.float32),
    }

    out, attn = multi_headed_attention(key_in, value_in, query_in, params, n_head)
    jax.block_until_ready((out, attn))

    assert out.shape == (B, S, d_model)
    assert attn.shape == (B * n_head, S, S)
    assert bool(jnp.all(jnp.isfinite(out))) and bool(jnp.all(jnp.isfinite(attn)))

    # loose-tolerance check against a pure-JAX reference (approx reciprocal in softmax)
    out_ref, attn_ref = _reference(key_in, value_in, query_in, params, n_head)
    assert bool(jnp.allclose(out, out_ref, rtol=5e-2, atol=5e-2))
    assert bool(jnp.allclose(attn, attn_ref, rtol=5e-2, atol=5e-2))

    print("KERNEL_OK")
</pallas_src>

<mosaic_0001>
module attributes {stable_mosaic.version = 11 : i64} {
  func.func @_linear_kernel(%arg0: i32, %arg1: i32, %arg2: i32, %arg3: memref<16x32xf32, #tpu.memory_space<vmem>>, %arg4: memref<32x32xf32, #tpu.memory_space<vmem>>, %arg5: memref<16x32xf32, #tpu.memory_space<vmem>>, %arg6: memref<16x32xf32, #tpu.memory_space<vmem>>) attributes {dimension_semantics = [#tpu.dimension_semantics<parallel>, #tpu.dimension_semantics<parallel>, #tpu.dimension_semantics<arbitrary>], iteration_bounds = array<i64: 1, 1, 1>, scalar_prefetch = 0 : i64, scratch_operands = 1 : i64, tpu.core_type = #tpu.core_type<tc>, window_params = [{transform_indices = @transform_0, window_bounds = array<i64: 16, 32>}, {transform_indices = @transform_1, window_bounds = array<i64: 32, 32>}, {transform_indices = @transform_2, window_bounds = array<i64: 16, 32>}]} {
    %c0_i32 = arith.constant 0 : i32
    %0 = arith.cmpi eq, %arg2, %c0_i32 : i32
    %1 = arith.extui %0 : i1 to i32
    %c0_i32_0 = arith.constant 0 : i32
    %2 = arith.cmpi ne, %1, %c0_i32_0 : i32
    scf.if %2 {
      %cst_10 = arith.constant 0.000000e+00 : f32
      %12 = vector.broadcast %cst_10 : f32 to vector<16x32xf32>
      %c0_11 = arith.constant 0 : index
      %c0_12 = arith.constant 0 : index
      %13 = vector.load %arg6[%c0_11, %c0_12] : memref<16x32xf32, #tpu.memory_space<vmem>>, vector<16x32xf32>
      tpu.vector_store %arg6[%c0_11, %c0_12], %12 {strides = array<i32>} : memref<16x32xf32, #tpu.memory_space<vmem>>, vector<16x32xf32>,
    } else {
    }
    %c0 = arith.constant 0 : index
    %c0_1 = arith.constant 0 : index
    %3 = vector.load %arg6[%c0, %c0_1] : memref<16x32xf32, #tpu.memory_space<vmem>>, vector<16x32xf32>
    %c0_2 = arith.constant 0 : index
    %c0_3 = arith.constant 0 : index
    %4 = vector.load %arg3[%c0_2, %c0_3] : memref<16x32xf32, #tpu.memory_space<vmem>>, vector<16x32xf32>
    %c0_4 = arith.constant 0 : index
    %c0_5 = arith.constant 0 : index
    %5 = vector.load %arg4[%c0_4, %c0_5] : memref<32x32xf32, #tpu.memory_space<vmem>>, vector<32x32xf32>
    %cst = arith.constant dense<0.000000e+00> : vector<16x32xf32>
    %6 = tpu.matmul %4, %5, %cst {dimension_numbers = #tpu.dot_dimension_numbers<[1], [1], [0], [0], [0, 0, 1, 0], [], []>} : vector<16x32xf32>, vector<32x32xf32>, vector<16x32xf32> -> vector<16x32xf32>
    %7 = arith.addf %3, %6 : vector<16x32xf32>
    %c0_6 = arith.constant 0 : index
    %c0_7 = arith.constant 0 : index
    %8 = vector.load %arg6[%c0_6, %c0_7] : memref<16x32xf32, #tpu.memory_space<vmem>>, vector<16x32xf32>
    tpu.vector_store %arg6[%c0_6, %c0_7], %7 {strides = array<i32>} : memref<16x32xf32, #tpu.memory_space<vmem>>, vector<16x32xf32>,
    %c0_i32_8 = arith.constant 0 : i32
    %9 = arith.cmpi eq, %arg2, %c0_i32_8 : i32
    %10 = arith.extui %9 : i1 to i32
    %c0_i32_9 = arith.constant 0 : i32
    %11 = arith.cmpi ne, %10, %c0_i32_9 : i32
    scf.if %11 {
      %c0_10 = arith.constant 0 : index
      %c0_11 = arith.constant 0 : index
      %12 = vector.load %arg6[%c0_10, %c0_11] : memref<16x32xf32, #tpu.memory_space<vmem>>, vector<16x32xf32>
      %c0_12 = arith.constant 0 : index
      %c0_13 = arith.constant 0 : index
      %13 = vector.load %arg5[%c0_12, %c0_13] : memref<16x32xf32, #tpu.memory_space<vmem>>, vector<16x32xf32>
      tpu.vector_store %arg5[%c0_12, %c0_13], %12 {strides = array<i32>} : memref<16x32xf32, #tpu.memory_space<vmem>>, vector<16x32xf32>,
    } else {
    }
    return
  }
  func.func @transform_0(%arg0: i32, %arg1: i32, %arg2: i32) -> (i32, i32) {
    %c0_i32 = arith.constant 0 : i32
    return %arg0, %arg2 : i32, i32
  }
  func.func @transform_1(%arg0: i32, %arg1: i32, %arg2: i32) -> (i32, i32) {
    %c0_i32 = arith.constant 0 : i32
    return %arg1, %arg2 : i32, i32
  }
  func.func @transform_2(%arg0: i32, %arg1: i32, %arg2: i32) -> (i32, i32) {
    %c0_i32 = arith.constant 0 : i32
    return %arg0, %arg1 : i32, i32
  }
}

</mosaic_0001>

<llo_original>
// kernel: tpu_custom_call.1
$region0: #{tpu_custom_call.1}
  #allocation0 [shape = 'u32[]', space=smem, size = 0x4, offset = 0x4, fixed_abs, tag = 'smem constant byte address 0x4 - core index']
  #allocation1 [shape = 'u32[72,128]{1,0:T(1,128)}', space=vmem, size = 0x9000, scoped, tag = 'internal scratch']
  #allocation2 [shape = 'f32[16,32]{1,0:T(8,128)}', space=vmem, size = 0x2000, scoped, tag = 'scratch operand']
  %s0 = inlined_call_operand.hbm [shape: f32[16,32], index: 0, kind: input, shape index: {}]
  %s1 = inlined_call_operand.hbm [shape: f32[32,32], index: 1, kind: input, shape index: {}]
  %s2 = inlined_call_operand.hbm [shape: f32[16,32], index: 2, kind: output, shape index: {}]
  %s3 = sld [smem:[#allocation0]]
  $region34: #{tpu_custom_call.1} parent=0
    _
  %s5 = ssub.s32 1, %s3
  %s6 = scalar_select 0, %s5, %s3
  $region1: #{tpu_custom_call.1} parent=0
    #allocation3 [shape = 'u8[8192]{0}', space=vmem, size = 0x2000, scoped, tag = 'input window, operand 0, single buffered']
    #allocation4 [shape = 's32[1]{0}', space=sflag, size = 0x4, scoped, tag = 'scoped memory for tpu_custom_call.1']
    #allocation5 [shape = 's32[1]{0}', space=sflag, size = 0x4, scoped, tag = 'scoped memory for tpu_custom_call.1']
    #allocation6 [shape = 'u8[16384]{0}', space=vmem, size = 0x4000, scoped, tag = 'input window, operand 1, single buffered']
    #allocation7 [shape = 's32[1]{0}', space=sflag, size = 0x4, scoped, tag = 'scoped memory for tpu_custom_call.1']
    #allocation8 [shape = 'u8[8192]{0}', space=vmem, size = 0x2000, scoped, tag = 'output window, operand 0, single buffered']
    %7 = vsyncpa [#allocation4], 0
    %8 = vsyncpa [#allocation7], 0
    %9 = vsyncpa [#allocation5], 0
    // Predicated region
    $region2: #{tpu_custom_call.1} parent=1 // pred_check
      _
    $region3: #{tpu_custom_call.1} parent=1 // pred_check_branch
      %11 = sbr.rel (0) target = $region5
    $region4: #{tpu_custom_call.1} parent=1 // pred_region
      %13 = vsyncadd [#allocation4], 0
      %s14 = sshll.u32 %s0, 4
      %s15 = int_to_ptr.hbm [resolvable:$true] %s14
      %s16 = sshll.u32 [#allocation3], 4
      %s17 = int_to_ptr.vmem [resolvable:$true] %s16
      %22 = dma.hbm_to_vmem [thread:$0]  %s15, 256, %s17, [#allocation4], 128, 128, 8
    $region5: #{tpu_custom_call.1} parent=1 // pred_fallthru
      _
    // Predicated region
    $region6: #{tpu_custom_call.1} parent=1 // pred_check
      _
    $region7: #{tpu_custom_call.1} parent=1 // pred_check_branch
      %24 = sbr.rel (0) target = $region9
    $region8: #{tpu_custom_call.1} parent=1 // pred_region
      %26 = vsyncadd [#allocation7], 0
      %s27 = sshll.u32 %s1, 4
      %s28 = int_to_ptr.hbm [resolvable:$true] %s27
      %s29 = sshll.u32 [#allocation6], 4
      %s30 = int_to_ptr.vmem [resolvable:$true] %s29
      %35 = dma.hbm_to_vmem [thread:$0]  %s28, 512, %s30, [#allocation7], 128, 128, 8
    $region9: #{tpu_custom_call.1} parent=1 // pred_fallthru
      _
    // Predicated region
    $region10: #{tpu_custom_call.1} parent=1 // pred_check
      _
    $region11: #{tpu_custom_call.1} parent=1 // pred_check_branch
      %37 = sbr.rel (0) target = $region13
    $region12: #{tpu_custom_call.1} parent=1 // pred_region
      %39 = dma.done [#allocation4], 256
    $region13: #{tpu_custom_call.1} parent=1 // pred_fallthru
      _
    // Predicated region
    $region14: #{tpu_custom_call.1} parent=1 // pred_check
      _
    $region15: #{tpu_custom_call.1} parent=1 // pred_check_branch
      %41 = sbr.rel (0) target = $region17
    $region16: #{tpu_custom_call.1} parent=1 // pred_region
      %43 = dma.done [#allocation7], 512
    $region17: #{tpu_custom_call.1} parent=1 // pred_fallthru
      _
    %p44 = scmp.eq.s32.totalorder 0, 0
    // Predicated region
    $region18: #{tpu_custom_call.1} parent=1 // pred_check
      %p45 = pneg %p44
    $region19: #{tpu_custom_call.1} parent=1 // pred_check_branch
      %47 = sbr.rel (%p45) target = $region21
    $region20: #{tpu_custom_call.1} parent=1 // pred_region
      %vm48 = vcmask 261120
      %49 = vst.msk [vmem:[#allocation2] sm:$0xff] %vm48, 0.0
      %50 = vst.msk [vmem:[#allocation2 + $0x8] sm:$0xff] %vm48, 0.0
    $region21: #{tpu_custom_call.1} parent=1 // pred_fallthru
      _
    %v51 = vld [vmem:[#allocation2] sm:$0xff]
    %v52 = vld [vmem:[#allocation2 + $0x8] sm:$0xff]
    %v53 = vld [vmem:[#allocation3] sm:$0xff]
    %v54 = vld [vmem:[#allocation3 + $0x8] sm:$0xff]
    %v55 = vld [vmem:[#allocation6] sm:$0xff]
    %v56 = vld [vmem:[#allocation6 + $0x8] sm:$0xff]
    %v57 = vld [vmem:[#allocation6 + $0x10] sm:$0xff]
    %v58 = vld [vmem:[#allocation6 + $0x18] sm:$0xff]
    %vm59 = vcmask 261120
    %v61 = vsel %vm59, %v53, 0
    %v64 = vsel %vm59, %v54, 0
    %v67 = vsel %vm59, %v55, 0
    %v70 = vsel %vm59, %v56, 0
    %v73 = vsel %vm59, %v57, 0
    %v76 = vsel %vm59, %v58, 0
    %78 = vmatpush.xpose.msra.mxu0 0.0
    %79 = vmatpush.xpose.msra.mxu0 0.0
    %80 = vmatpush.xpose.msra.mxu0 0.0
    %81 = vmatpush.xpose.msra.mxu0 0.0
    %82 = vmatpush.xpose.msra.mxu0 0.0
    %83 = vmatpush.xpose.msra.mxu0 0.0
    %84 = vmatpush.xpose.msra.mxu0 0.0
    %85 = vmatpush.xpose.msra.mxu0 0.0
    %86 = vmatpush.xpose.msra.mxu0 0.0
    %87 = vmatpush.xpose.msra.mxu0 0.0
    %88 = vmatpush.xpose.msra.mxu0 0.0
    %89 = vmatpush.xpose.msra.mxu0 0.0
    %90 = vmatpush.xpose.msra.mxu0 %v76
    %91 = vmatpush.xpose.msra.mxu0 %v73
    %92 = vmatpush.xpose.msra.mxu0 %v70
    %93 = vmatpush.xpose.msra.mxu0 %v67
    %94 = vmatmul.f32.gmra.mxu0 %v61
    %v95 = vpop.f32.mrf.mxu0
    %v96 = vadd.f32 0.0, %v95
    %97 = vmatmul.f32.gmra.mxu0 %v64
    %v98 = vpop.f32.mrf.mxu0
    %v99 = vadd.f32 0.0, %v98
    %100 = vdwg.mxu0
    %v101 = vadd.f32 %v51, %v96
    %v102 = vadd.f32 %v52, %v99
    %103 = vst.msk [vmem:[#allocation2] sm:$0xff] %vm59, %v101
    %104 = vst.msk [vmem:[#allocation2 + $0x8] sm:$0xff] %vm59, %v102
    // Predicated region
    $region22: #{tpu_custom_call.1} parent=1 // pred_check
      %p105 = pneg %p44
    $region23: #{tpu_custom_call.1} parent=1 // pred_check_branch
      %107 = sbr.rel (%p105) target = $region25
    $region24: #{tpu_custom_call.1} parent=1 // pred_region
      %v108 = vld [vmem:[#allocation2] sm:$0xff]
      %v109 = vld [vmem:[#allocation2 + $0x8] sm:$0xff]
      %110 = vst.msk [vmem:[#allocation8] sm:$0xff] %vm59, %v108
      %111 = vst.msk [vmem:[#allocation8 + $0x8] sm:$0xff] %vm59, %v109
    $region25: #{tpu_custom_call.1} parent=1 // pred_fallthru
      _
    // Predicated region
    $region26: #{tpu_custom_call.1} parent=1 // pred_check
      _
    $region27: #{tpu_custom_call.1} parent=1 // pred_check_branch
      %113 = sbr.rel (0) target = $region29
    $region28: #{tpu_custom_call.1} parent=1 // pred_region
      %115 = vsyncadd [#allocation5], 0
      %s116 = sshll.u32 [#allocation8], 4
      %s117 = int_to_ptr.vmem [resolvable:$true] %s116
      %s118 = sshll.u32 %s2, 4
      %s119 = int_to_ptr.hbm [resolvable:$true] %s118
      %124 = dma.vmem_to_hbm [thread:$0]  %s117, 256, %s119, [#allocation5], 128, 128, 8
    $region29: #{tpu_custom_call.1} parent=1 // pred_fallthru
      _
    // Predicated region
    $region30: #{tpu_custom_call.1} parent=1 // pred_check
      _
    $region31: #{tpu_custom_call.1} parent=1 // pred_check_branch
      %126 = sbr.rel (0) target = $region33
    $region32: #{tpu_custom_call.1} parent=1 // pred_region
      %128 = dma.done [#allocation5], 256
    $region33: #{tpu_custom_call.1} parent=1 // pred_fallthru
      _
    %129 = vsyncpa [#allocation4], 1
    %130 = vsyncpa [#allocation7], 1
    %131 = vsyncpa [#allocation5], 1

</llo_original>
